<compile_context>
chip_gen: v7x
topology: tpu7x:2x2x1
jax: 0.10.0
libtpu: 0.0.40
codegen_flags: <defaults>
</compile_context>

<pallas_src>
import functools

import jax
import jax.numpy as jnp
from jax.experimental import pallas as pl
from jax.experimental.pallas import tpu as pltpu


_LANE_TILE_CAP = 16384  # caps the unrolled 128-wide fold at 128 adds per tile


def _dive_kernel(*refs, num_inputs, n, hw, thw, acc_w, mask_tail):
    """Fused streaming spatial-sum + per-channel-block std epilogue."""
    in_refs = refs[:num_inputs]
    out_ref = refs[num_inputs]
    acc_refs = refs[num_inputs + 1:]
    hj = pl.program_id(1)

    @pl.when(hj == 0)
    def _init():
        for acc in acc_refs:
            acc[...] = jnp.zeros_like(acc)

    for idx in range(num_inputs):
        xb = in_refs[idx][...].astype(jnp.float32)          # (n, c_tile, thw)
        if mask_tail:
            # Last H*W block may run past hw; zero the out-of-range lanes.
            lane = jax.lax.broadcasted_iota(jnp.int32, xb.shape, dimension=2)
            xb = jnp.where(hj * thw + lane < hw, xb, 0.0)
        # Lane-dense fold: keep 128 lanes live per row, defer the cross-lane
        # reduce to the epilogue (keeps XLU / store slots off the hot loop).
        part = xb[..., 0:acc_w]
        for k in range(1, thw // acc_w):
            part = part + xb[..., k * acc_w:(k + 1) * acc_w]
        acc_refs[idx][...] += part

    @pl.when(hj == pl.num_programs(1) - 1)
    def _epilogue():
        inv_hw = 1.0 / float(hw)
        inv_n = 1.0 / float(n)
        row_ids = jax.lax.broadcasted_iota(
            jnp.int32, (1, num_inputs, 128), dimension=1)
        vals = jnp.zeros((1, num_inputs, 128), jnp.float32)
        for idx in range(num_inputs):
            acc = acc_refs[idx][...]                             # (n, ct, acc_w)
            m = jnp.sum(acc, axis=-1, keepdims=True) * inv_hw    # (n, ct, 1)
            mu = jnp.sum(m, axis=0, keepdims=True) * inv_n       # (1, ct, 1)
            d = m - mu
            var = jnp.sum(d * d, axis=0, keepdims=True) * inv_n  # population var
            std = jnp.sqrt(jnp.maximum(var, 1e-12))               # clamp, sqrt
            tot = jnp.sum(std, axis=1, keepdims=True)             # (1, 1, 1)
            vals = jnp.where(row_ids == idx, -tot, vals)
        out_ref[...] = vals                                       # lane-dense


def _vmem_capacity_bytes():
    try:
        cap = getattr(pltpu.get_tpu_info(), "vmem_capacity_bytes", None)
        if cap:
            return int(cap)
    except Exception:
        pass
    return 64 * 1024 * 1024  # conservative default = v7x per-TensorCore VMEM


def _choose_tiles(n, c, hw, itemsize, per_input_budget):
    """Pick (c_tile, thw, acc_w) for one streamed input.

    per_input_budget covers the two double-buffered (n, c_tile, thw) blocks
    plus the (n, c_tile, acc_w) f32 accumulator of ONE input.  c_tile is a
    divisor of C that is either a multiple of 8 or C itself; thw is a
    multiple of 128 or the full H*W (legal TPU block shapes).
    """
    # Proper multiple-of-8 divisors first (>= 2 channel blocks lets the
    # "parallel" grid axis use both v7x TensorCores); full C as last resort.
    cands = sorted({d for d in range(8, c, 8) if c % d == 0}, reverse=True) + [c]

    hw_small = hw < 128
    hw_floor = hw if hw_small else (hw // 128) * 128  # keep block <= array dim

    def max_lanes(ct):
        rows = n * ct
        return (per_input_budget // rows - 4 * 128) // (2 * itemsize)

    chosen = None
    for ct in cands:
        avail = max_lanes(ct)
        if hw_small:
            if avail >= hw:
                chosen = (ct, hw)
                break
            continue
        avail = (avail // 128) * 128
        if avail >= min(512, hw_floor):
            chosen = (ct, min(hw_floor, avail, _LANE_TILE_CAP))
            break
    if chosen is None:
        ct = min(cands)
        if hw_small:
            chosen = (ct, hw)
        else:
            avail = max(128, (max_lanes(ct) // 128) * 128)
            chosen = (ct, min(hw_floor, avail, _LANE_TILE_CAP))

    c_tile, thw = chosen
    acc_w = 128 if thw >= 128 else thw
    return c_tile, thw, acc_w


def _neg_std_sums_pallas(xs):
    """Per-input -sum(std over batch of spatial means) for same-shaped NCHW arrays."""
    x0 = xs[0]
    n, c, h, w = x0.shape
    hw = h * w
    num_inputs = len(xs)
    itemsize = x0.dtype.itemsize

    vmem_cap = _vmem_capacity_bytes()
    # ~half of VMEM for the double-buffered input streams, split across inputs.
    per_input_budget = max((vmem_cap // 2) // num_inputs, 256 * 1024)
    c_tile, thw, acc_w = _choose_tiles(n, c, hw, itemsize, per_input_budget)

    c_blocks = c // c_tile
    hw_blocks = pl.cdiv(hw, thw)

    block_bytes = n * c_tile * thw * itemsize
    acc_bytes = n * c_tile * acc_w * 4
    vmem_limit = min(
        vmem_cap,
        max(num_inputs * (2 * block_bytes + acc_bytes) + (8 << 20), 32 << 20))

    kernel = functools.partial(
        _dive_kernel, num_inputs=num_inputs, n=n, hw=hw, thw=thw, acc_w=acc_w,
        mask_tail=(hw % thw != 0))

    cost = pl.CostEstimate(
        flops=2 * sum(int(x.size) for x in xs),
        transcendentals=num_inputs * c,
        bytes_accessed=sum(int(x.size) * x.dtype.itemsize for x in xs)
        + c_blocks * num_inputs * 128 * 4,
    )

    out = pl.pallas_call(
        kernel,
        out_shape=jax.ShapeDtypeStruct((c_blocks, num_inputs, 128), jnp.float32),
        grid_spec=pltpu.PrefetchScalarGridSpec(
            num_scalar_prefetch=0,
            grid=(c_blocks, hw_blocks),
            in_specs=[pl.BlockSpec((n, c_tile, thw), lambda ci, hj: (0, ci, hj))
                      for _ in xs],
            out_specs=pl.BlockSpec((1, num_inputs, 128),
                                   lambda ci, hj: (ci, 0, 0)),
            scratch_shapes=[pltpu.VMEM((n, c_tile, acc_w), jnp.float32)
                            for _ in xs],
        ),
        compiler_params=pltpu.CompilerParams(
            dimension_semantics=("parallel", "arbitrary"),
            vmem_limit_bytes=int(vmem_limit),
        ),
        cost_estimate=cost,
    )(*[x.reshape(n, c, hw) for x in xs])

    # Every lane of a row holds the same partial; take lane 0, sum channel blocks.
    return jnp.sum(out[:, :, 0], axis=0)          # (num_inputs,) float32


def dive_loss(y_pred, b_pred):
    """y_pred, b_pred: NCHW arrays.  Returns the scalar float32 DiveLoss."""
    if y_pred.shape == b_pred.shape and y_pred.dtype == b_pred.dtype:
        parts = _neg_std_sums_pallas((y_pred, b_pred))   # fused single call
        return parts[0] + parts[1]
    return (_neg_std_sums_pallas((y_pred,))[0]
            + _neg_std_sums_pallas((b_pred,))[0])


def dive_loss_ref(y_pred, b_pred):
    """Pure-JAX reference mirroring the PyTorch forward (computed in f32)."""
    def one(x):
        x = x.astype(jnp.float32)
        m = x.mean(axis=(2, 3))
        mu = m.mean(axis=0)
        var = ((m - mu) ** 2).mean(axis=0, keepdims=True)
        std = jnp.sqrt(jnp.maximum(var, 1e-12))
        return -std.sum()
    return one(y_pred) + one(b_pred)


if __name__ == "__main__":
    key = jax.random.PRNGKey(0)
    ky, kb = jax.random.split(key)
    # Small shapes consistent with the module: N=2, C=4, 16x16 spatial.
    y_pred = jax.random.uniform(ky, (2, 4, 16, 16), dtype=jnp.float32)
    b_pred = jax.random.uniform(kb, (2, 4, 16, 16), dtype=jnp.float32)

    loss = jax.block_until_ready(dive_loss(y_pred, b_pred))
    ref = jax.block_until_ready(dive_loss_ref(y_pred, b_pred))

    assert jnp.allclose(loss, ref, rtol=1e-5, atol=1e-5), (loss, ref)
    print("KERNEL_OK")
</pallas_src>

<mosaic_0001>
module attributes {stable_mosaic.version = 11 : i64} {
  func.func @_dive_kernel(%arg0: i32, %arg1: i32, %arg2: memref<2x4x256xf32, #tpu.memory_space<vmem>>, %arg3: memref<2x4x256xf32, #tpu.memory_space<vmem>>, %arg4: memref<1x2x128xf32, #tpu.memory_space<vmem>>, %arg5: memref<2x4x128xf32, #tpu.memory_space<vmem>>, %arg6: memref<2x4x128xf32, #tpu.memory_space<vmem>>) attributes {dimension_semantics = [#tpu.dimension_semantics<parallel>, #tpu.dimension_semantics<arbitrary>], iteration_bounds = array<i64: 1, 1>, scalar_prefetch = 0 : i64, scratch_operands = 2 : i64, tpu.core_type = #tpu.core_type<tc>, window_params = [{transform_indices = @transform_0, window_bounds = array<i64: 2, 4, 256>}, {transform_indices = @transform_1, window_bounds = array<i64: 2, 4, 256>}, {transform_indices = @transform_2, window_bounds = array<i64: 1, 2, 128>}]} {
    %c0_i32 = arith.constant 0 : i32
    %0 = arith.cmpi eq, %arg1, %c0_i32 : i32
    %1 = arith.extui %0 : i1 to i32
    %c0_i32_0 = arith.constant 0 : i32
    %2 = arith.cmpi ne, %1, %c0_i32_0 : i32
    scf.if %2 {
      %cst = arith.constant 0.000000e+00 : f32
      %20 = vector.broadcast %cst : f32 to vector<2x4x128xf32>
      %c0_20 = arith.constant 0 : index
      %c0_21 = arith.constant 0 : index
      %c0_22 = arith.constant 0 : index
      %21 = vector.load %arg5[%c0_20, %c0_21, %c0_22] : memref<2x4x128xf32, #tpu.memory_space<vmem>>, vector<2x4x128xf32>
      tpu.vector_store %arg5[%c0_20, %c0_21, %c0_22], %20 {strides = array<i32>} : memref<2x4x128xf32, #tpu.memory_space<vmem>>, vector<2x4x128xf32>,
      %cst_23 = arith.constant 0.000000e+00 : f32
      %22 = vector.broadcast %cst_23 : f32 to vector<2x4x128xf32>
      %c0_24 = arith.constant 0 : index
      %c0_25 = arith.constant 0 : index
      %c0_26 = arith.constant 0 : index
      %23 = vector.load %arg6[%c0_24, %c0_25, %c0_26] : memref<2x4x128xf32, #tpu.memory_space<vmem>>, vector<2x4x128xf32>
      tpu.vector_store %arg6[%c0_24, %c0_25, %c0_26], %22 {strides = array<i32>} : memref<2x4x128xf32, #tpu.memory_space<vmem>>, vector<2x4x128xf32>,
    } else {
    }
    %c0 = arith.constant 0 : index
    %c0_1 = arith.constant 0 : index
    %c0_2 = arith.constant 0 : index
    %3 = vector.load %arg2[%c0, %c0_1, %c0_2] : memref<2x4x256xf32, #tpu.memory_space<vmem>>, vector<2x4x256xf32>
    %4 = vector.extract_strided_slice %3 {offsets = [0, 0, 0], sizes = [2, 4, 128], strides = [1, 1, 1]} : vector<2x4x256xf32> to vector<2x4x128xf32>
    %5 = vector.extract_strided_slice %3 {offsets = [0, 0, 128], sizes = [2, 4, 128], strides = [1, 1, 1]} : vector<2x4x256xf32> to vector<2x4x128xf32>
    %6 = arith.addf %4, %5 : vector<2x4x128xf32>
    %c0_3 = arith.constant 0 : index
    %c0_4 = arith.constant 0 : index
    %c0_5 = arith.constant 0 : index
    %7 = vector.load %arg5[%c0_3, %c0_4, %c0_5] : memref<2x4x128xf32, #tpu.memory_space<vmem>>, vector<2x4x128xf32>
    %8 = arith.addf %7, %6 : vector<2x4x128xf32>
    %c0_6 = arith.constant 0 : index
    %c0_7 = arith.constant 0 : index
    %c0_8 = arith.constant 0 : index
    %9 = vector.load %arg5[%c0_6, %c0_7, %c0_8] : memref<2x4x128xf32, #tpu.memory_space<vmem>>, vector<2x4x128xf32>
    tpu.vector_store %arg5[%c0_6, %c0_7, %c0_8], %8 {strides = array<i32>} : memref<2x4x128xf32, #tpu.memory_space<vmem>>, vector<2x4x128xf32>,
    %c0_9 = arith.constant 0 : index
    %c0_10 = arith.constant 0 : index
    %c0_11 = arith.constant 0 : index
    %10 = vector.load %arg3[%c0_9, %c0_10, %c0_11] : memref<2x4x256xf32, #tpu.memory_space<vmem>>, vector<2x4x256xf32>
    %11 = vector.extract_strided_slice %10 {offsets = [0, 0, 0], sizes = [2, 4, 128], strides = [1, 1, 1]} : vector<2x4x256xf32> to vector<2x4x128xf32>
    %12 = vector.extract_strided_slice %10 {offsets = [0, 0, 128], sizes = [2, 4, 128], strides = [1, 1, 1]} : vector<2x4x256xf32> to vector<2x4x128xf32>
    %13 = arith.addf %11, %12 : vector<2x4x128xf32>
    %c0_12 = arith.constant 0 : index
    %c0_13 = arith.constant 0 : index
    %c0_14 = arith.constant 0 : index
    %14 = vector.load %arg6[%c0_12, %c0_13, %c0_14] : memref<2x4x128xf32, #tpu.memory_space<vmem>>, vector<2x4x128xf32>
    %15 = arith.addf %14, %13 : vector<2x4x128xf32>
    %c0_15 = arith.constant 0 : index
    %c0_16 = arith.constant 0 : index
    %c0_17 = arith.constant 0 : index
    %16 = vector.load %arg6[%c0_15, %c0_16, %c0_17] : memref<2x4x128xf32, #tpu.memory_space<vmem>>, vector<2x4x128xf32>
    tpu.vector_store %arg6[%c0_15, %c0_16, %c0_17], %15 {strides = array<i32>} : memref<2x4x128xf32, #tpu.memory_space<vmem>>, vector<2x4x128xf32>,
    %c0_i32_18 = arith.constant 0 : i32
    %17 = arith.cmpi eq, %arg1, %c0_i32_18 : i32
    %18 = arith.extui %17 : i1 to i32
    %c0_i32_19 = arith.constant 0 : i32
    %19 = arith.cmpi ne, %18, %c0_i32_19 : i32
    scf.if %19 {
      %20 = tpu.iota {dimensions = array<i32: 1>} : vector<1x2x128xi32>
      %cst = arith.constant 0.000000e+00 : f32
      %21 = vector.broadcast %cst : f32 to vector<1x2x128xf32>
      %c0_20 = arith.constant 0 : index
      %c0_21 = arith.constant 0 : index
      %c0_22 = arith.constant 0 : index
      %22 = vector.load %arg5[%c0_20, %c0_21, %c0_22] : memref<2x4x128xf32, #tpu.memory_space<vmem>>, vector<2x4x128xf32>
      %cst_23 = arith.constant dense<0.000000e+00> : vector<2x4xf32>
      %23 = vector.multi_reduction <add>, %22, %cst_23 [2] : vector<2x4x128xf32> to vector<2x4xf32>
      %24 = vector.shape_cast %23 : vector<2x4xf32> to vector<2x4x1xf32>
      %cst_24 = arith.constant 3.906250e-03 : f32
      %25 = vector.broadcast %cst_24 : f32 to vector<2x4x1xf32>
      %26 = arith.mulf %24, %25 : vector<2x4x1xf32>
      %cst_25 = arith.constant dense<0.000000e+00> : vector<4x1xf32>
      %27 = vector.multi_reduction <add>, %26, %cst_25 [0] : vector<2x4x1xf32> to vector<4x1xf32>
      %28 = vector.shape_cast %27 : vector<4x1xf32> to vector<1x4x1xf32>
      %cst_26 = arith.constant 5.000000e-01 : f32
      %29 = vector.broadcast %cst_26 : f32 to vector<1x4x1xf32>
      %30 = arith.mulf %28, %29 : vector<1x4x1xf32>
      %31 = vector.broadcast %30 : vector<1x4x1xf32> to vector<2x4x1xf32>
      %32 = arith.subf %26, %31 : vector<2x4x1xf32>
      %33 = arith.mulf %32, %32 : vector<2x4x1xf32>
      %cst_27 = arith.constant dense<0.000000e+00> : vector<4x1xf32>
      %34 = vector.multi_reduction <add>, %33, %cst_27 [0] : vector<2x4x1xf32> to vector<4x1xf32>
      %35 = vector.shape_cast %34 : vector<4x1xf32> to vector<1x4x1xf32>
      %cst_28 = arith.constant 5.000000e-01 : f32
      %36 = vector.broadcast %cst_28 : f32 to vector<1x4x1xf32>
      %37 = arith.mulf %35, %36 : vector<1x4x1xf32>
      %cst_29 = arith.constant 9.99999996E-13 : f32
      %38 = vector.broadcast %cst_29 : f32 to vector<1x4x1xf32>
      %39 = arith.maximumf %37, %38 : vector<1x4x1xf32>
      %40 = math.sqrt %39 : vector<1x4x1xf32>
      %cst_30 = arith.constant dense<0.000000e+00> : vector<1x1xf32>
      %41 = vector.multi_reduction <add>, %40, %cst_30 [1] : vector<1x4x1xf32> to vector<1x1xf32>
      %42 = vector.shape_cast %41 : vector<1x1xf32> to vector<1x1x1xf32>
      %c0_i32_31 = arith.constant 0 : i32
      %43 = vector.broadcast %c0_i32_31 : i32 to vector<1x2x128xi32>
      %44 = arith.cmpi eq, %20, %43 : vector<1x2x128xi32>
      %cst_32 = arith.constant 0.000000e+00 : f32
      %45 = vector.broadcast %cst_32 : f32 to vector<1x1x1xf32>
      %46 = arith.subf %45, %42 : vector<1x1x1xf32>
      %47 = vector.shape_cast %46 : vector<1x1x1xf32> to vector<1x1x1xf32>
      %48 = vector.broadcast %47 : vector<1x1x1xf32> to vector<1x2x128xf32>
      %49 = arith.select %44, %48, %21 : vector<1x2x128xi1>, vector<1x2x128xf32>
      %c0_33 = arith.constant 0 : index
      %c0_34 = arith.constant 0 : index
      %c0_35 = arith.constant 0 : index
      %50 = vector.load %arg6[%c0_33, %c0_34, %c0_35] : memref<2x4x128xf32, #tpu.memory_space<vmem>>, vector<2x4x128xf32>
      %cst_36 = arith.constant dense<0.000000e+00> : vector<2x4xf32>
      %51 = vector.multi_reduction <add>, %50, %cst_36 [2] : vector<2x4x128xf32> to vector<2x4xf32>
      %52 = vector.shape_cast %51 : vector<2x4xf32> to vector<2x4x1xf32>
      %cst_37 = arith.constant 3.906250e-03 : f32
      %53 = vector.broadcast %cst_37 : f32 to vector<2x4x1xf32>
      %54 = arith.mulf %52, %53 : vector<2x4x1xf32>
      %cst_38 = arith.constant dense<0.000000e+00> : vector<4x1xf32>
      %55 = vector.multi_reduction <add>, %54, %cst_38 [0] : vector<2x4x1xf32> to vector<4x1xf32>
      %56 = vector.shape_cast %55 : vector<4x1xf32> to vector<1x4x1xf32>
      %cst_39 = arith.constant 5.000000e-01 : f32
      %57 = vector.broadcast %cst_39 : f32 to vector<1x4x1xf32>
      %58 = arith.mulf %56, %57 : vector<1x4x1xf32>
      %59 = vector.broadcast %58 : vector<1x4x1xf32> to vector<2x4x1xf32>
      %60 = arith.subf %54, %59 : vector<2x4x1xf32>
      %61 = arith.mulf %60, %60 : vector<2x4x1xf32>
      %cst_40 = arith.constant dense<0.000000e+00> : vector<4x1xf32>
      %62 = vector.multi_reduction <add>, %61, %cst_40 [0] : vector<2x4x1xf32> to vector<4x1xf32>
      %63 = vector.shape_cast %62 : vector<4x1xf32> to vector<1x4x1xf32>
      %cst_41 = arith.constant 5.000000e-01 : f32
      %64 = vector.broadcast %cst_41 : f32 to vector<1x4x1xf32>
      %65 = arith.mulf %63, %64 : vector<1x4x1xf32>
      %cst_42 = arith.constant 9.99999996E-13 : f32
      %66 = vector.broadcast %cst_42 : f32 to vector<1x4x1xf32>
      %67 = arith.maximumf %65, %66 : vector<1x4x1xf32>
      %68 = math.sqrt %67 : vector<1x4x1xf32>
      %cst_43 = arith.constant dense<0.000000e+00> : vector<1x1xf32>
      %69 = vector.multi_reduction <add>, %68, %cst_43 [1] : vector<1x4x1xf32> to vector<1x1xf32>
      %70 = vector.shape_cast %69 : vector<1x1xf32> to vector<1x1x1xf32>
      %c1_i32 = arith.constant 1 : i32
      %71 = vector.broadcast %c1_i32 : i32 to vector<1x2x128xi32>
      %72 = arith.cmpi eq, %20, %71 : vector<1x2x128xi32>
      %cst_44 = arith.constant 0.000000e+00 : f32
      %73 = vector.broadcast %cst_44 : f32 to vector<1x1x1xf32>
      %74 = arith.subf %73, %70 : vector<1x1x1xf32>
      %75 = vector.shape_cast %74 : vector<1x1x1xf32> to vector<1x1x1xf32>
      %76 = vector.broadcast %75 : vector<1x1x1xf32> to vector<1x2x128xf32>
      %77 = arith.select %72, %76, %49 : vector<1x2x128xi1>, vector<1x2x128xf32>
      %c0_45 = arith.constant 0 : index
      %c0_46 = arith.constant 0 : index
      %c0_47 = arith.constant 0 : index
      %78 = vector.load %arg4[%c0_45, %c0_46, %c0_47] : memref<1x2x128xf32, #tpu.memory_space<vmem>>, vector<1x2x128xf32>
      tpu.vector_store %arg4[%c0_45, %c0_46, %c0_47], %77 {strides = array<i32>} : memref<1x2x128xf32, #tpu.memory_space<vmem>>, vector<1x2x128xf32>,
    } else {
    }
    return
  }
  func.func @transform_0(%arg0: i32, %arg1: i32) -> (i32, i32, i32) {
    %c0_i32 = arith.constant 0 : i32
    %c0_i32_0 = arith.constant 0 : i32
    return %c0_i32, %arg0, %arg1 : i32, i32, i32
  }
  func.func @transform_1(%arg0: i32, %arg1: i32) -> (i32, i32, i32) {
    %c0_i32 = arith.constant 0 : i32
    %c0_i32_0 = arith.constant 0 : i32
    return %c0_i32, %arg0, %arg1 : i32, i32, i32
  }
  func.func @transform_2(%arg0: i32, %arg1: i32) -> (i32, i32, i32) {
    %c0_i32 = arith.constant 0 : i32
    %c0_i32_0 = arith.constant 0 : i32
    %c0_i32_1 = arith.constant 0 : i32
    return %arg0, %c0_i32, %c0_i32_0 : i32, i32, i32
  }
}

</mosaic_0001>

<llo_original>
// kernel: tpu_custom_call.1
$region0: #{tpu_custom_call.1}
  #allocation0 [shape = 'u32[]', space=smem, size = 0x4, offset = 0x4, fixed_abs, tag = 'smem constant byte address 0x4 - core index']
  #allocation1 [shape = 'u32[144,128]{1,0:T(1,128)}', space=vmem, size = 0x12000, scoped, tag = 'internal scratch']
  #allocation2 [shape = 'f32[2,4,128]{2,1,0:T(4,128)}', space=vmem, size = 0x1000, scoped, tag = 'scratch operand']
  #allocation3 [shape = 'f32[2,4,128]{2,1,0:T(4,128)}', space=vmem, size = 0x1000, scoped, tag = 'scratch operand']
  %s0 = inlined_call_operand.hbm [shape: f32[2,4,256], index: 0, kind: input, shape index: {}]
  %s1 = inlined_call_operand.hbm [shape: f32[2,4,256], index: 1, kind: input, shape index: {}]
  %s2 = inlined_call_operand.hbm [shape: f32[1,2,128], index: 2, kind: output, shape index: {}]
  %s3 = sld [smem:[#allocation0]]
  $region34: #{tpu_custom_call.1} parent=0
    _
  %s5 = ssub.s32 1, %s3
  %s6 = scalar_select 0, %s5, %s3
  $region1: #{tpu_custom_call.1} parent=0
    #allocation4 [shape = 'u8[8192]{0}', space=vmem, size = 0x2000, scoped, tag = 'input window, operand 0, single buffered']
    #allocation5 [shape = 's32[1]{0}', space=sflag, size = 0x4, scoped, tag = 'scoped memory for tpu_custom_call.1']
    #allocation6 [shape = 's32[1]{0}', space=sflag, size = 0x4, scoped, tag = 'scoped memory for tpu_custom_call.1']
    #allocation7 [shape = 'u8[8192]{0}', space=vmem, size = 0x2000, scoped, tag = 'input window, operand 1, single buffered']
    #allocation8 [shape = 's32[1]{0}', space=sflag, size = 0x4, scoped, tag = 'scoped memory for tpu_custom_call.1']
    #allocation9 [shape = 'u8[1024]{0}', space=vmem, size = 0x400, scoped, tag = 'output window, operand 0, single buffered']
    %7 = vsyncpa [#allocation5], 0
    %8 = vsyncpa [#allocation8], 0
    %9 = vsyncpa [#allocation6], 0
    // Predicated region
    $region2: #{tpu_custom_call.1} parent=1 // pred_check
      _
    $region3: #{tpu_custom_call.1} parent=1 // pred_check_branch
      %11 = sbr.rel (0) target = $region5
    $region4: #{tpu_custom_call.1} parent=1 // pred_region
      %s13 = ssub.s32 256, 256
      %14 = vsyncadd [#allocation5], %s13
      %s15 = sshll.u32 [#allocation4], 4
      %s16 = int_to_ptr.vmem [resolvable:$true] %s15
      %21 = dma.hbm_to_vmem [thread:$0]  %s0, 256, %s16, [#allocation5], 128, 128, 8
    $region5: #{tpu_custom_call.1} parent=1 // pred_fallthru
      _
    // Predicated region
    $region6: #{tpu_custom_call.1} parent=1 // pred_check
      _
    $region7: #{tpu_custom_call.1} parent=1 // pred_check_branch
      %23 = sbr.rel (0) target = $region9
    $region8: #{tpu_custom_call.1} parent=1 // pred_region
      %s25 = ssub.s32 256, 256
      %26 = vsyncadd [#allocation8], %s25
      %s27 = sshll.u32 [#allocation7], 4
      %s28 = int_to_ptr.vmem [resolvable:$true] %s27
      %33 = dma.hbm_to_vmem [thread:$0]  %s1, 256, %s28, [#allocation8], 128, 128, 8
    $region9: #{tpu_custom_call.1} parent=1 // pred_fallthru
      _
    // Predicated region
    $region10: #{tpu_custom_call.1} parent=1 // pred_check
      _
    $region11: #{tpu_custom_call.1} parent=1 // pred_check_branch
      %35 = sbr.rel (0) target = $region13
    $region12: #{tpu_custom_call.1} parent=1 // pred_region
      %36 = dma.done [#allocation5], 256
    $region13: #{tpu_custom_call.1} parent=1 // pred_fallthru
      _
    // Predicated region
    $region14: #{tpu_custom_call.1} parent=1 // pred_check
      _
    $region15: #{tpu_custom_call.1} parent=1 // pred_check_branch
      %38 = sbr.rel (0) target = $region17
    $region16: #{tpu_custom_call.1} parent=1 // pred_region
      %39 = dma.done [#allocation8], 256
    $region17: #{tpu_custom_call.1} parent=1 // pred_fallthru
      _
    %p40 = scmp.eq.s32.totalorder 0, 0
    // Predicated region
    $region18: #{tpu_custom_call.1} parent=1 // pred_check
      %p41 = pneg %p40
    $region19: #{tpu_custom_call.1} parent=1 // pred_check_branch
      %43 = sbr.rel (%p41) target = $region21
    $region20: #{tpu_custom_call.1} parent=1 // pred_region
      %44 = vst [vmem:[#allocation2] sm:$0xf] 0.0
      %45 = vst [vmem:[#allocation2 + $0x4] sm:$0xf] 0.0
      %46 = vst [vmem:[#allocation3] sm:$0xf] 0.0
      %47 = vst [vmem:[#allocation3 + $0x4] sm:$0xf] 0.0
    $region21: #{tpu_custom_call.1} parent=1 // pred_fallthru
      _
    %v48 = vld [vmem:[#allocation4] sm:$0xff]
    %v49 = vld [vmem:[#allocation4 + $0x8] sm:$0xff]
    %v52 = vrot.slane %v48, 4
    %v53 = vrot.slane %v49, 4
    %v56 = vadd.f32 %v48, %v52
    %v57 = vadd.f32 %v49, %v53
    %v58 = vld [vmem:[#allocation2] sm:$0xf]
    %v59 = vld [vmem:[#allocation2 + $0x4] sm:$0xf]
    %v60 = vadd.f32 %v58, %v56
    %v61 = vadd.f32 %v59, %v57
    %62 = vst [vmem:[#allocation2] sm:$0xf] %v60
    %63 = vst [vmem:[#allocation2 + $0x4] sm:$0xf] %v61
    %v64 = vld [vmem:[#allocation7] sm:$0xff]
    %v65 = vld [vmem:[#allocation7 + $0x8] sm:$0xff]
    %v68 = vrot.slane %v64, 4
    %v69 = vrot.slane %v65, 4
    %v72 = vadd.f32 %v64, %v68
    %v73 = vadd.f32 %v65, %v69
    %v74 = vld [vmem:[#allocation3] sm:$0xf]
    %v75 = vld [vmem:[#allocation3 + $0x4] sm:$0xf]
    %v76 = vadd.f32 %v74, %v72
    %v77 = vadd.f32 %v75, %v73
    %78 = vst [vmem:[#allocation3] sm:$0xf] %v76
    %79 = vst [vmem:[#allocation3 + $0x4] sm:$0xf] %v77
    // Predicated region
    $region22: #{tpu_custom_call.1} parent=1 // pred_check
      %p80 = pneg %p40
    $region23: #{tpu_custom_call.1} parent=1 // pred_check_branch
      %82 = sbr.rel (%p80) target = $region25
    $region24: #{tpu_custom_call.1} parent=1 // pred_region
      %v83 = vlaneseq
      %v84 = vshrl.u32 %v83, 7
      %v85 = vld [vmem:[#allocation2] sm:$0xf]
      %v86 = vld [vmem:[#allocation2 + $0x4] sm:$0xf]
      %vm87 = vcmask 1043456
      %v88 = vsel %vm87, %v85, 0.0
      %89 = vadd.xlane.f32.xlu0 %v88
      %v90 = vpop.xlane.xlu0 %89
      %v91 = vsel %vm87, %v86, 0.0
      %92 = vadd.xlane.f32.xlu0 %v91
      %v93 = vpop.xlane.xlu0 %92
      %v94 = vmul.f32 %v90, 0.00390625
      %v95 = vmul.f32 %v93, 0.00390625
      %v96 = vsel %vm87, %v94, 0.0
      %v97 = vsel %vm87, %v95, 0.0
      %v98 = vadd.f32 %v96, %v97
      %v99 = vmul.f32 %v98, 0.5
      %v100 = vsub.f32 %v94, %v99
      %v101 = vsub.f32 %v95, %v99
      %v102 = vmul.f32 %v100, %v100
      %v103 = vmul.f32 %v101, %v101
      %v104 = vsel %vm87, %v102, 0.0
      %v105 = vsel %vm87, %v103, 0.0
      %v106 = vadd.f32 %v104, %v105
      %v107 = vmul.f32 %v106, 0.5
      %v108 = vmax.f32 %v107, 1e-12
      %v109 = vrsqrt.pop %v108
      %v110 = vmul.f32 %v108, %v109
      %vm111 = vcmp.eq.f32.partialorder %v108, inf
      %v112 = vsel %vm111, %v108, %v110
      %vm113 = vcmp.eq.f32.partialorder %v108, 0.0
      %v114 = vand.u32 %v108, 2147483648
      %v115 = vsel %vm113, %v114, %v112
      %v116 = vsel %vm87, %v115, 0.0
      %v117 = vrot.slane %v116, 4
      %v118 = vadd.f32 %v116, %v117
      %v119 = vrot.slane %v118, 2
      %v120 = vadd.f32 %v118, %v119
      %v121 = vrot.slane %v120, 1
      %v122 = vadd.f32 %v120, %v121
      %vm123 = vcmp.eq.s32.totalorder %v84, 0
      %v124 = vsub.f32 0.0, %v122
      %v125 = vsel %vm123, %v124, 0.0
      %v126 = vld [vmem:[#allocation3] sm:$0xf]
      %v127 = vld [vmem:[#allocation3 + $0x4] sm:$0xf]
      %v128 = vsel %vm87, %v126, 0.0
      %129 = vadd.xlane.f32.xlu0 %v128
      %v130 = vpop.xlane.xlu0 %129
      %v131 = vsel %vm87, %v127, 0.0
      %132 = vadd.xlane.f32.xlu0 %v131
      %v133 = vpop.xlane.xlu0 %132
      %v134 = vmul.f32 %v130, 0.00390625
      %v135 = vmul.f32 %v133, 0.00390625
      %v136 = vsel %vm87, %v134, 0.0
      %v137 = vsel %vm87, %v135, 0.0
      %v138 = vadd.f32 %v136, %v137
      %v139 = vmul.f32 %v138, 0.5
      %v140 = vsub.f32 %v134, %v139
      %v141 = vsub.f32 %v135, %v139
      %v142 = vmul.f32 %v140, %v140
      %v143 = vmul.f32 %v141, %v141
      %v144 = vsel %vm87, %v142, 0.0
      %v145 = vsel %vm87, %v143, 0.0
      %v146 = vadd.f32 %v144, %v145
      %v147 = vmul.f32 %v146, 0.5
      %v148 = vmax.f32 %v147, 1e-12
      %v149 = vrsqrt.pop %v148
      %v150 = vmul.f32 %v148, %v149
      %vm151 = vcmp.eq.f32.partialorder %v148, inf
      %v152 = vsel %vm151, %v148, %v150
      %vm153 = vcmp.eq.f32.partialorder %v148, 0.0
      %v154 = vand.u32 %v148, 2147483648
      %v155 = vsel %vm153, %v154, %v152
      %v156 = vsel %vm87, %v155, 0.0
      %v157 = vrot.slane %v156, 4
      %v158 = vadd.f32 %v156, %v157
      %v159 = vrot.slane %v158, 2
      %v160 = vadd.f32 %v158, %v159
      %v161 = vrot.slane %v160, 1
      %v162 = vadd.f32 %v160, %v161
      %vm163 = vcmp.eq.s32.totalorder %v84, 1
      %v164 = vsub.f32 0.0, %v162
      %v165 = vsel %vm163, %v164, %v125
      %166 = vst [vmem:[#allocation9] sm:$0x3] %v165
    $region25: #{tpu_custom_call.1} parent=1 // pred_fallthru
      _
    // Predicated region
    $region26: #{tpu_custom_call.1} parent=1 // pred_check
      _
    $region27: #{tpu_custom_call.1} parent=1 // pred_check_branch
      %168 = sbr.rel (0) target = $region29
    $region28: #{tpu_custom_call.1} parent=1 // pred_region
      %s170 = ssub.s32 32, 32
      %171 = vsyncadd [#allocation6], %s170
      %s173 = sshll.u32 [#allocation9], 4
      %s174 = int_to_ptr.vmem [resolvable:$true] %s173
      %176 = dma.vmem_to_hbm [thread:$0]  %s174, 32, %s2, [#allocation6]
    $region29: #{tpu_custom_call.1} parent=1 // pred_fallthru
      _
    // Predicated region
    $region30: #{tpu_custom_call.1} parent=1 // pred_check
      _
    $region31: #{tpu_custom_call.1} parent=1 // pred_check_branch
      %178 = sbr.rel (0) target = $region33
    $region32: #{tpu_custom_call.1} parent=1 // pred_region
      %179 = dma.done [#allocation6], 32
    $region33: #{tpu_custom_call.1} parent=1 // pred_fallthru
      _
    %180 = vsyncpa [#allocation5], 1
    %181 = vsyncpa [#allocation8], 1
    %182 = vsyncpa [#allocation6], 1

</llo_original>
